<compile_context>
chip_gen: v5e
topology: v5e:2x2
jax: 0.10.0
libtpu: 0.0.40
codegen_flags: <defaults>
</compile_context>

<pallas_src>
import numpy as np
import jax
import jax.numpy as jnp
from jax.experimental import pallas as pl
from jax.experimental.pallas import tpu as pltpu


def _round_up(x, m):
    return (x + m - 1) // m * m


def _adaint_kernel(x_ref, w_ref, b_ref, post_ref, out_ref):
    """One folded batch tile: linear -> exp -> fused (cumsum|sum) matmul -> normalize.

    x_ref    : (TB, fold*F)          bf16 folded input tile
    w_ref    : (fold*F, fold*OUT)    bf16 block-diag weight (group-mean centering folded in)
    b_ref    : (1, fold*OUT)         f32 centered bias row
    post_ref : (fold*OUT, PAD+NCV)   f32 fused [tri | 0-pad | grp] post-processing matrix
    out_ref  : (TB, NCV)             f32 flat sampling coordinates (un-folded by wrapper)
    """
    ncv = out_ref.shape[-1]
    den_off = post_ref.shape[-1] - ncv      # multiple of 128 -> lane-tile aligned slice

    # Linear on the MXU (bf16 inputs, f32 accumulation).  Per-group mean
    # centering is already folded into w/b, so exp() is softmax-stabilized
    # per group and den >= group_size (no underflow).
    y = jnp.dot(x_ref[...], w_ref[...], preferred_element_type=jnp.float32)
    e = jnp.exp(y + b_ref[...])

    # Fused (softmax-normalize + cumsum + left zero-pad) as ONE MXU matmul:
    #   cols [0, ncv)              -> prefix sums (strictly-lower-triangular blocks)
    #   cols [den_off, den_off+ncv)-> group sums broadcast over each group's lanes
    post = jnp.dot(e, post_ref[...], preferred_element_type=jnp.float32)
    num = post[:, :ncv]
    den = post[:, den_off:]

    # EUP approximate reciprocal + one Newton step (full f32 accuracy, no VALU divide).
    inv = pl.reciprocal(den, approx=True)
    inv = inv * (2.0 - den * inv)
    out_ref[...] = num * inv


def _build_matrices(n_colors, n_vertices, out_dim, adaint_share, fold):
    """Host-side constants: centering projector and fused post-processing matrix."""
    D1 = n_vertices - 1
    V, C = n_vertices, n_colors

    # Per-sample tri (cumsum + left zero pad) and grp (group-sum broadcast).
    co = np.arange(C * V)
    col_group, col_j = co // V, co % V
    r = np.arange(out_dim)
    if adaint_share:
        # One D1-wide group feeds every color group (repeat_interleave semantics).
        same_group = np.ones((out_dim, C * V), dtype=bool)
        row_k = r
    else:
        same_group = (r // D1)[:, None] == col_group[None, :]
        row_k = r % D1
    tri = (same_group & (row_k[:, None] < col_j[None, :])).astype(np.float32)
    grp = same_group.astype(np.float32)

    # Exact per-group softmax stabilization as a linear projector P = I - M,
    # M = group-mean matrix (symmetric).  softmax_g(y) == softmax_g(y @ P).
    gid = np.zeros((out_dim,), np.int64) if adaint_share else r // D1
    M = (gid[:, None] == gid[None, :]).astype(np.float32) / D1
    P = np.eye(out_dim, dtype=np.float32) - M

    # Fold `fold` batch rows into lanes: block-diagonal replication.
    eye_f = np.eye(fold, dtype=np.float32)
    tri_f = np.kron(eye_f, tri)
    grp_f = np.kron(eye_f, grp)

    ncv = fold * C * V
    den_off = _round_up(ncv, 128)           # keep den slice lane-tile aligned
    post = np.zeros((fold * out_dim, den_off + ncv), np.float32)
    post[:, :ncv] = tri_f
    post[:, den_off:] = grp_f
    return P, post


def adaint_forward(x, weight, bias, *, n_colors, n_vertices,
                   adaint_share=False, tile_b=8192, fold=None,
                   matmul_dtype=jnp.bfloat16):
    """JAX/Pallas equivalent of AdaInt.forward.

    Args:
        x:      (B, n_feats) image representation.
        weight: (OUT, n_feats) linear weight (PyTorch convention),
                OUT = (n_vertices - 1) * (1 if adaint_share else n_colors).
        bias:   (OUT,) linear bias.
    Returns:
        (B, n_colors, n_vertices) sampling coordinates.
    """
    B, F = x.shape
    D1 = n_vertices - 1
    V, C = n_vertices, n_colors
    out_dim = D1 * (1 if adaint_share else C)
    assert weight.shape == (out_dim, F), weight.shape
    assert bias.shape == (out_dim,), bias.shape

    # Fold factor: pack `fold` consecutive batch rows into lanes so the linear
    # matmul runs with K = fold*F (~128) and the elementwise/EUP/store path is
    # near lane-dense.  (B, F) <-> (B/fold, fold*F) and (B, C*V) <->
    # (B/fold, fold*C*V) are byte-identical row-major, so folding is free.
    if fold is None:
        fold = max(1, 128 // F)

    P, post_np = _build_matrices(C, V, out_dim, adaint_share, fold)

    # Fold the exact per-group mean-centering into the linear parameters:
    #   y - mean_g(y) = x @ (W^T P) + b P,   P = I - M (symmetric).
    w_c = jnp.asarray(P) @ jnp.asarray(weight, jnp.float32)       # (OUT, F)
    b_c = jnp.asarray(P) @ jnp.asarray(bias, jnp.float32)         # (OUT,)

    # Pre-transposed, fold-way block-diagonal weight in (K, N) orientation so
    # the kernel contracts LHS-last vs RHS-first (no in-kernel transpose).
    eye_f = jnp.eye(fold, dtype=jnp.float32)
    w_f = jnp.kron(eye_f, w_c.T).astype(matmul_dtype)             # (fold*F, fold*OUT)
    b_f = jnp.tile(b_c, fold).reshape(1, fold * out_dim)          # f32
    post = jnp.asarray(post_np)                                   # f32

    # Batch tiling on folded rows: large tiles to amortize per-grid-step
    # overhead, aligned for bf16 sublane packing, and >= 2 grid steps whenever
    # the batch allows (v7x megacore sharding + DMA/compute overlap).
    align = 16
    rows = -(-B // fold)
    tb = min(tile_b, _round_up(rows, align))
    if rows > align:
        tb = min(tb, _round_up(-(-rows // 2), align))
    rows_pad = _round_up(rows, tb)
    nb = rows_pad // tb

    b_pad = rows_pad * fold
    xp = jnp.asarray(x, jnp.float32)
    if b_pad != B:
        xp = jnp.pad(xp, ((0, b_pad - B), (0, 0)))
    x_f = xp.reshape(rows_pad, fold * F).astype(matmul_dtype)

    ncv = fold * C * V
    out2d = pl.pallas_call(
        _adaint_kernel,
        out_shape=jax.ShapeDtypeStruct((rows_pad, ncv), jnp.float32),
        grid_spec=pltpu.PrefetchScalarGridSpec(
            num_scalar_prefetch=0,
            grid=(nb,),
            in_specs=[
                pl.BlockSpec((tb, fold * F), lambda i: (i, 0)),              # x tile
                pl.BlockSpec((fold * F, fold * out_dim), lambda i: (0, 0)),  # weight
                pl.BlockSpec((1, fold * out_dim), lambda i: (0, 0)),         # bias row
                pl.BlockSpec(post.shape, lambda i: (0, 0)),                  # fused tri|grp
            ],
            out_specs=pl.BlockSpec((tb, ncv), lambda i: (i, 0)),
        ),
        compiler_params=pltpu.CompilerParams(
            dimension_semantics=("parallel",),
            vmem_limit_bytes=48 * 1024 * 1024,
        ),
    )(x_f, w_f, b_f, post)

    # Free layout plumbing: (rows_pad, fold*C*V) is byte-identical to
    # (rows_pad*fold, C*V); slice the real batch and expose (B, C, V).
    return out2d.reshape(rows_pad * fold, C * V)[:B].reshape(B, C, V)


def _adaint_reference(x, weight, bias, *, n_colors, n_vertices,
                      adaint_share=False):
    """Pure-JAX reference mirroring the PyTorch forward (f32)."""
    B = x.shape[0]
    y = x @ weight.T + bias
    intervals = y.reshape(B, -1, n_vertices - 1)
    if adaint_share:
        intervals = jnp.repeat(intervals, n_colors, axis=1)
    intervals = jax.nn.softmax(intervals, axis=-1)
    cums = jnp.cumsum(intervals, axis=-1)
    return jnp.pad(cums, ((0, 0), (0, 0), (1, 0)))


if __name__ == "__main__":
    # Small shapes consistent with the module: (b, f) input representation.
    B = 2
    n_feats = 32
    n_colors = 3
    n_vertices = 9          # -> output (B, 3, 9)

    key = jax.random.PRNGKey(0)
    kx, kw, kb, kw2, kb2 = jax.random.split(key, 5)
    x = jax.random.normal(kx, (B, n_feats), dtype=jnp.float32)

    ok = True
    for share in (False, True):
        repeat = 1 if share else n_colors
        out_dim = (n_vertices - 1) * repeat
        kwi, kbi = (kw, kb) if not share else (kw2, kb2)
        # Deterministic synthetic parameters (non-trivial so the math is
        # exercised; the module's init_weights() would give a uniform output).
        weight = 0.05 * jax.random.normal(kwi, (out_dim, n_feats),
                                          dtype=jnp.float32)
        bias = jnp.ones((out_dim,), dtype=jnp.float32) + 0.01 * (
            jax.random.normal(kbi, (out_dim,), dtype=jnp.float32))

        out = adaint_forward(x, weight, bias, n_colors=n_colors,
                             n_vertices=n_vertices, adaint_share=share)
        out = jax.block_until_ready(out)
        ref = _adaint_reference(x, weight, bias, n_colors=n_colors,
                                n_vertices=n_vertices, adaint_share=share)

        assert out.shape == (B, n_colors, n_vertices), out.shape
        err = float(jnp.max(jnp.abs(out - ref)))
        # bf16 MXU inputs + matmul-based cumsum -> ~1e-3-level deviations.
        if not jnp.allclose(out, ref, atol=5e-3, rtol=5e-3):
            ok = False
            print(f"MISMATCH share={share} max_abs_err={err}")

    if ok:
        print("KERNEL_OK")
</pallas_src>

<mosaic_0001>
module attributes {stable_mosaic.version = 11 : i64} {
  func.func @_adaint_kernel(%arg0: i32, %arg1: memref<16x128xbf16, #tpu.memory_space<vmem>>, %arg2: memref<128x96xbf16, #tpu.memory_space<vmem>>, %arg3: memref<1x96xf32, #tpu.memory_space<vmem>>, %arg4: memref<96x236xf32, #tpu.memory_space<vmem>>, %arg5: memref<16x108xf32, #tpu.memory_space<vmem>>) attributes {dimension_semantics = [#tpu.dimension_semantics<parallel>], iteration_bounds = array<i64: 1>, scalar_prefetch = 0 : i64, scratch_operands = 0 : i64, tpu.core_type = #tpu.core_type<tc>, window_params = [{transform_indices = @transform_0, window_bounds = array<i64: 16, 128>}, {pipeline_mode = #tpu.pipeline_mode<synchronous>, transform_indices = @transform_1, window_bounds = array<i64: 128, 96>}, {pipeline_mode = #tpu.pipeline_mode<synchronous>, transform_indices = @transform_2, window_bounds = array<i64: 1, 96>}, {pipeline_mode = #tpu.pipeline_mode<synchronous>, transform_indices = @transform_3, window_bounds = array<i64: 96, 236>}, {transform_indices = @transform_4, window_bounds = array<i64: 16, 108>}]} {
    %c0 = arith.constant 0 : index
    %c0_0 = arith.constant 0 : index
    %0 = vector.load %arg1[%c0, %c0_0] : memref<16x128xbf16, #tpu.memory_space<vmem>>, vector<16x128xbf16>
    %c0_1 = arith.constant 0 : index
    %c0_2 = arith.constant 0 : index
    %1 = vector.load %arg2[%c0_1, %c0_2] : memref<128x96xbf16, #tpu.memory_space<vmem>>, vector<128x96xbf16>
    %cst = arith.constant dense<0.000000e+00> : vector<16x96xf32>
    %2 = tpu.matmul %0, %1, %cst {dimension_numbers = #tpu.dot_dimension_numbers<[1], [0], [0], [1], [0, 0, 1, 1], [], []>} : vector<16x128xbf16>, vector<128x96xbf16>, vector<16x96xf32> -> vector<16x96xf32>
    %c0_3 = arith.constant 0 : index
    %c0_4 = arith.constant 0 : index
    %3 = vector.load %arg3[%c0_3, %c0_4] : memref<1x96xf32, #tpu.memory_space<vmem>>, vector<1x96xf32>
    %4 = vector.broadcast %3 : vector<1x96xf32> to vector<16x96xf32>
    %5 = arith.addf %2, %4 : vector<16x96xf32>
    %6 = math.exp %5 : vector<16x96xf32>
    %c0_5 = arith.constant 0 : index
    %c0_6 = arith.constant 0 : index
    %7 = vector.load %arg4[%c0_5, %c0_6] : memref<96x236xf32, #tpu.memory_space<vmem>>, vector<96x236xf32>
    %cst_7 = arith.constant dense<0.000000e+00> : vector<16x236xf32>
    %8 = tpu.matmul %6, %7, %cst_7 {dimension_numbers = #tpu.dot_dimension_numbers<[1], [0], [0], [1], [0, 0, 1, 1], [], []>} : vector<16x96xf32>, vector<96x236xf32>, vector<16x236xf32> -> vector<16x236xf32>
    %9 = vector.extract_strided_slice %8 {offsets = [0, 0], sizes = [16, 108], strides = [1, 1]} : vector<16x236xf32> to vector<16x108xf32>
    %10 = vector.extract_strided_slice %8 {offsets = [0, 128], sizes = [16, 108], strides = [1, 1]} : vector<16x236xf32> to vector<16x108xf32>
    %11 = tpu.reciprocal %10 {approx = true} : vector<16x108xf32> -> vector<16x108xf32>
    %12 = arith.mulf %10, %11 : vector<16x108xf32>
    %cst_8 = arith.constant 2.000000e+00 : f32
    %13 = vector.broadcast %cst_8 : f32 to vector<16x108xf32>
    %14 = arith.subf %13, %12 : vector<16x108xf32>
    %15 = arith.mulf %11, %14 : vector<16x108xf32>
    %16 = arith.mulf %9, %15 : vector<16x108xf32>
    %c0_9 = arith.constant 0 : index
    %c0_10 = arith.constant 0 : index
    %17 = vector.load %arg5[%c0_9, %c0_10] : memref<16x108xf32, #tpu.memory_space<vmem>>, vector<16x108xf32>
    tpu.vector_store %arg5[%c0_9, %c0_10], %16 {strides = array<i32>} : memref<16x108xf32, #tpu.memory_space<vmem>>, vector<16x108xf32>,
    return
  }
  func.func @transform_0(%arg0: i32) -> (i32, i32) {
    %c0_i32 = arith.constant 0 : i32
    %c0_i32_0 = arith.constant 0 : i32
    return %arg0, %c0_i32 : i32, i32
  }
  func.func @transform_1(%arg0: i32) -> (i32, i32) {
    %c0_i32 = arith.constant 0 : i32
    %c0_i32_0 = arith.constant 0 : i32
    %c0_i32_1 = arith.constant 0 : i32
    return %c0_i32, %c0_i32_0 : i32, i32
  }
  func.func @transform_2(%arg0: i32) -> (i32, i32) {
    %c0_i32 = arith.constant 0 : i32
    %c0_i32_0 = arith.constant 0 : i32
    %c0_i32_1 = arith.constant 0 : i32
    return %c0_i32, %c0_i32_0 : i32, i32
  }
  func.func @transform_3(%arg0: i32) -> (i32, i32) {
    %c0_i32 = arith.constant 0 : i32
    %c0_i32_0 = arith.constant 0 : i32
    %c0_i32_1 = arith.constant 0 : i32
    return %c0_i32, %c0_i32_0 : i32, i32
  }
  func.func @transform_4(%arg0: i32) -> (i32, i32) {
    %c0_i32 = arith.constant 0 : i32
    %c0_i32_0 = arith.constant 0 : i32
    return %arg0, %c0_i32 : i32, i32
  }
}

</mosaic_0001>

<llo_original>
// kernel: tpu_custom_call.1
$region0: #{tpu_custom_call.1}
  #allocation0 [shape = 'u32[]', space=smem, size = 0x4, offset = 0x4, fixed_abs, tag = 'smem constant byte address 0x4 - core index']
  #allocation1 [shape = 'u32[72,128]{1,0:T(1,128)}', space=vmem, size = 0x9000, scoped, tag = 'internal scratch']
  %s0 = inlined_call_operand.vmem [shape: bf16[16,128], index: 0, kind: input, shape index: {}]
  %s1 = inlined_call_operand.vmem [shape: bf16[128,96], index: 1, kind: input, shape index: {}]
  %s2 = inlined_call_operand.vmem [shape: f32[1,96], index: 2, kind: input, shape index: {}]
  %s3 = inlined_call_operand.hbm [shape: f32[96,236], index: 3, kind: input, shape index: {}]
  %s4 = inlined_call_operand.hbm [shape: f32[16,108], index: 4, kind: output, shape index: {}]
  %s5 = sld [smem:[#allocation0]]
  $region30: #{tpu_custom_call.1} parent=0
    _
  %s7 = ssub.s32 1, %s5
  %s8 = scalar_select 0, %s7, %s5
  $region1: #{tpu_custom_call.1} parent=0
    #allocation2 [shape = 'u8[98304]{0}', space=vmem, size = 0x18000, scoped, tag = 'input window, operand 3, single buffered']
    #allocation3 [shape = 's32[1]{0}', space=sflag, size = 0x4, scoped, tag = 'scoped memory for tpu_custom_call.1']
    #allocation4 [shape = 's32[1]{0}', space=sflag, size = 0x4, scoped, tag = 'scoped memory for tpu_custom_call.1']
    #allocation5 [shape = 'u8[8192]{0}', space=vmem, size = 0x2000, scoped, tag = 'output window, operand 0, single buffered']
    %9 = vsyncpa [#allocation3], 0
    %10 = vsyncpa [#allocation4], 0
    // Predicated region
    $region2: #{tpu_custom_call.1} parent=1 // pred_check
      _
    $region3: #{tpu_custom_call.1} parent=1 // pred_check_branch
      %12 = sbr.rel (0) target = $region5
    $region4: #{tpu_custom_call.1} parent=1 // pred_region
      _
    $region5: #{tpu_custom_call.1} parent=1 // pred_fallthru
      _
    // Predicated region
    $region6: #{tpu_custom_call.1} parent=1 // pred_check
      _
    $region7: #{tpu_custom_call.1} parent=1 // pred_check_branch
      %14 = sbr.rel (0) target = $region9
    $region8: #{tpu_custom_call.1} parent=1 // pred_region
      _
    $region9: #{tpu_custom_call.1} parent=1 // pred_fallthru
      _
    // Predicated region
    $region10: #{tpu_custom_call.1} parent=1 // pred_check
      _
    $region11: #{tpu_custom_call.1} parent=1 // pred_check_branch
      %16 = sbr.rel (0) target = $region13
    $region12: #{tpu_custom_call.1} parent=1 // pred_region
      _
    $region13: #{tpu_custom_call.1} parent=1 // pred_fallthru
      _
    // Predicated region
    $region14: #{tpu_custom_call.1} parent=1 // pred_check
      _
    $region15: #{tpu_custom_call.1} parent=1 // pred_check_branch
      %18 = sbr.rel (0) target = $region17
    $region16: #{tpu_custom_call.1} parent=1 // pred_region
      %20 = vsyncadd [#allocation3], 0
      %s21 = sshll.u32 %s3, 4
      %s22 = int_to_ptr.hbm [resolvable:$true] %s21
      %s23 = sshll.u32 [#allocation2], 4
      %s24 = int_to_ptr.vmem [resolvable:$true] %s23
      %29 = dma.hbm_to_vmem [thread:$0]  %s22, 3072, %s24, [#allocation3], 256, 256, 16
    $region17: #{tpu_custom_call.1} parent=1 // pred_fallthru
      _
    // Predicated region
    $region18: #{tpu_custom_call.1} parent=1 // pred_check
      _
    $region19: #{tpu_custom_call.1} parent=1 // pred_check_branch
      %31 = sbr.rel (0) target = $region21
    $region20: #{tpu_custom_call.1} parent=1 // pred_region
      %33 = dma.done [#allocation3], 3072
    $region21: #{tpu_custom_call.1} parent=1 // pred_fallthru
      _
    %v34 = vld [vmem:[%s0] sm:$0xf]
    %v35 = vld [vmem:[%s0 + $0x4] sm:$0xf]
    %v36 = vld [vmem:[%s1] sm:$0xf]
    %v37 = vld [vmem:[%s1 + $0x4] sm:$0xf]
    %v38 = vld [vmem:[%s1 + $0x8] sm:$0xf]
    %v39 = vld [vmem:[%s1 + $0xc] sm:$0xf]
    %v40 = vld [vmem:[%s1 + $0x10] sm:$0xf]
    %v41 = vld [vmem:[%s1 + $0x14] sm:$0xf]
    %v42 = vld [vmem:[%s1 + $0x18] sm:$0xf]
    %v43 = vld [vmem:[%s1 + $0x1c] sm:$0xf]
    %v44 = vld [vmem:[%s1 + $0x20] sm:$0xf]
    %v45 = vld [vmem:[%s1 + $0x24] sm:$0xf]
    %v46 = vld [vmem:[%s1 + $0x28] sm:$0xf]
    %v47 = vld [vmem:[%s1 + $0x2c] sm:$0xf]
    %v48 = vld [vmem:[%s1 + $0x30] sm:$0xf]
    %v49 = vld [vmem:[%s1 + $0x34] sm:$0xf]
    %v50 = vld [vmem:[%s1 + $0x38] sm:$0xf]
    %v51 = vld [vmem:[%s1 + $0x3c] sm:$0xf]
    %v52 = vld [vmem:[%s2] sm:$0x1]
    %v54 = vperm.slane %v52, 0
    %v58 = vunpack.c.l.b16 %v34
    %v59 = vunpack.c.l.b16 %v35
    %v60 = vpack.c.b16 %v59, %v58
    %v78 = vunpack.c.l.b16 %v36
    %v79 = vunpack.c.l.b16 %v37
    %v80 = vunpack.c.l.b16 %v38
    %v81 = vunpack.c.l.b16 %v39
    %v82 = vunpack.c.l.b16 %v40
    %v83 = vunpack.c.l.b16 %v41
    %v84 = vunpack.c.l.b16 %v42
    %v85 = vunpack.c.l.b16 %v43
    %v86 = vunpack.c.l.b16 %v44
    %v87 = vunpack.c.l.b16 %v45
    %v88 = vunpack.c.l.b16 %v46
    %v89 = vunpack.c.l.b16 %v47
    %v90 = vunpack.c.l.b16 %v48
    %v91 = vunpack.c.l.b16 %v49
    %v92 = vunpack.c.l.b16 %v50
    %v93 = vunpack.c.l.b16 %v51
    %v94 = vpack.c.b16 %v79, %v78
    %v95 = vpack.c.b16 %v81, %v80
    %v96 = vpack.c.b16 %v83, %v82
    %v97 = vpack.c.b16 %v85, %v84
    %v98 = vpack.c.b16 %v87, %v86
    %v99 = vpack.c.b16 %v89, %v88
    %v100 = vpack.c.b16 %v91, %v90
    %v101 = vpack.c.b16 %v93, %v92
    %110 = vmatpush.bf16.msra.mxu0 %v101
    %111 = vmatpush.bf16.msra.mxu0 %v100
    %112 = vmatpush.bf16.msra.mxu0 %v99
    %113 = vmatpush.bf16.msra.mxu0 %v98
    %114 = vmatpush.bf16.msra.mxu0 %v97
    %115 = vmatpush.bf16.msra.mxu0 %v96
    %116 = vmatpush.bf16.msra.mxu0 %v95
    %117 = vmatpush.bf16.msra.mxu0 %v94
    %118 = vmatmul.bf16.gmra.mxu0 %v60
    %v119 = vpop.f32.mrf.mxu0
    %v120 = vadd.f32 %v54, %v119
    %v121 = vpop.f32.mrf.mxu0
    %v122 = vadd.f32 %v54, %v121
    %123 = vdwg.mxu0
    %v124 = vmul.f32 %v120, 1.442695
    %v125 = vpow.pop %v124
    %v126 = vmul.f32 %v122, 1.442695
    %v127 = vpow.pop %v126
    %v128 = vld [vmem:[#allocation2] sm:$0xff]
    %v129 = vld [vmem:[#allocation2 + $0x8] sm:$0xff]
    %v130 = vld [vmem:[#allocation2 + $0x10] sm:$0xff]
    %v131 = vld [vmem:[#allocation2 + $0x18] sm:$0xff]
    %v132 = vld [vmem:[#allocation2 + $0x20] sm:$0xff]
    %v133 = vld [vmem:[#allocation2 + $0x28] sm:$0xff]
    %v134 = vld [vmem:[#allocation2 + $0x30] sm:$0xff]
    %v135 = vld [vmem:[#allocation2 + $0x38] sm:$0xff]
    %v136 = vld [vmem:[#allocation2 + $0x40] sm:$0xff]
    %v137 = vld [vmem:[#allocation2 + $0x48] sm:$0xff]
    %v138 = vld [vmem:[#allocation2 + $0x50] sm:$0xff]
    %v139 = vld [vmem:[#allocation2 + $0x58] sm:$0xff]
    %v140 = vld [vmem:[#allocation2 + $0x60] sm:$0xff]
    %v141 = vld [vmem:[#allocation2 + $0x68] sm:$0xff]
    %v142 = vld [vmem:[#allocation2 + $0x70] sm:$0xff]
    %v143 = vld [vmem:[#allocation2 + $0x78] sm:$0xff]
    %v144 = vld [vmem:[#allocation2 + $0x80] sm:$0xff]
    %v145 = vld [vmem:[#allocation2 + $0x88] sm:$0xff]
    %v146 = vld [vmem:[#allocation2 + $0x90] sm:$0xff]
    %v147 = vld [vmem:[#allocation2 + $0x98] sm:$0xff]
    %v148 = vld [vmem:[#allocation2 + $0xa0] sm:$0xff]
    %v149 = vld [vmem:[#allocation2 + $0xa8] sm:$0xff]
    %v150 = vld [vmem:[#allocation2 + $0xb0] sm:$0xff]
    %v151 = vld [vmem:[#allocation2 + $0xb8] sm:$0xff]
    %vm152 = vcmask 785408
    %v154 = vsel %vm152, %v125, 0
    %v157 = vsel %vm152, %v127, 0
    %159 = vmatpush.msra.mxu0 0.0
    %160 = vmatpush.msra.mxu0 0.0
    %161 = vmatpush.msra.mxu0 0.0
    %162 = vmatpush.msra.mxu0 0.0
    %163 = vmatpush.msra.mxu0 %v150
    %164 = vmatpush.msra.mxu0 %v148
    %165 = vmatpush.msra.mxu0 %v146
    %166 = vmatpush.msra.mxu0 %v144
    %167 = vmatpush.msra.mxu0 %v142
    %168 = vmatpush.msra.mxu0 %v140
    %169 = vmatpush.msra.mxu0 %v138
    %170 = vmatpush.msra.mxu0 %v136
    %171 = vmatpush.msra.mxu0 %v134
    %172 = vmatpush.msra.mxu0 %v132
    %173 = vmatpush.msra.mxu0 %v130
    %174 = vmatpush.msra.mxu0 %v128
    %175 = vmatmul.f32.gmra.mxu0 %v154
    %v176 = vpop.f32.mrf.mxu0
    %v177 = vadd.f32 0.0, %v176
    %178 = vmatmul.f32.gmra.mxu0 %v157
    %v179 = vpop.f32.mrf.mxu0
    %v180 = vadd.f32 0.0, %v179
    %181 = vdwg.mxu0
    %182 = vmatpush.msra.mxu0 0.0
    %183 = vmatpush.msra.mxu0 0.0
    %184 = vmatpush.msra.mxu0 0.0
    %185 = vmatpush.msra.mxu0 0.0
    %186 = vmatpush.msra.mxu0 %v151
    %187 = vmatpush.msra.mxu0 %v149
    %188 = vmatpush.msra.mxu0 %v147
    %189 = vmatpush.msra.mxu0 %v145
    %190 = vmatpush.msra.mxu0 %v143
    %191 = vmatpush.msra.mxu0 %v141
    %192 = vmatpush.msra.mxu0 %v139
    %193 = vmatpush.msra.mxu0 %v137
    %194 = vmatpush.msra.mxu0 %v135
    %195 = vmatpush.msra.mxu0 %v133
    %196 = vmatpush.msra.mxu0 %v131
    %197 = vmatpush.msra.mxu0 %v129
    %198 = vmatmul.f32.gmra.mxu0 %v154
    %v199 = vpop.f32.mrf.mxu0
    %v200 = vadd.f32 0.0, %v199
    %201 = vmatmul.f32.gmra.mxu0 %v157
    %v202 = vpop.f32.mrf.mxu0
    %v203 = vadd.f32 0.0, %v202
    %204 = vdwg.mxu0
    %v205 = vrcp.pop %v200
    %v206 = vrcp.pop %v203
    %v207 = vmul.f32 %v200, %v205
    %v208 = vmul.f32 %v203, %v206
    %v209 = vsub.f32 2.0, %v207
    %v210 = vsub.f32 2.0, %v208
    %v211 = vmul.f32 %v205, %v209
    %v212 = vmul.f32 %v206, %v210
    %v213 = vmul.f32 %v177, %v211
    %v214 = vmul.f32 %v180, %v212
    %vm215 = vcmask 883712
    %216 = vst.msk [vmem:[#allocation5] sm:$0xff] %vm215, %v213
    %217 = vst.msk [vmem:[#allocation5 + $0x8] sm:$0xff] %vm215, %v214
    // Predicated region
    $region22: #{tpu_custom_call.1} parent=1 // pred_check
      _
    $region23: #{tpu_custom_call.1} parent=1 // pred_check_branch
      %219 = sbr.rel (0) target = $region25
    $region24: #{tpu_custom_call.1} parent=1 // pred_region
      %221 = vsyncadd [#allocation4], 0
      %s222 = sshll.u32 [#allocation5], 4
      %s223 = int_to_ptr.vmem [resolvable:$true] %s222
      %s224 = sshll.u32 %s4, 4
      %s225 = int_to_ptr.hbm [resolvable:$true] %s224
      %230 = dma.vmem_to_hbm [thread:$0]  %s223, 256, %s225, [#allocation4], 128, 128, 8
    $region25: #{tpu_custom_call.1} parent=1 // pred_fallthru
      _
    // Predicated region
    $region26: #{tpu_custom_call.1} parent=1 // pred_check
      _
    $region27: #{tpu_custom_call.1} parent=1 // pred_check_branch
      %232 = sbr.rel (0) target = $region29
    $region28: #{tpu_custom_call.1} parent=1 // pred_region
      %234 = dma.done [#allocation4], 256
    $region29: #{tpu_custom_call.1} parent=1 // pred_fallthru
      _
    %235 = vsyncpa [#allocation3], 1
    %236 = vsyncpa [#allocation4], 1

</llo_original>
